<compile_context>
chip_gen: v7x
topology: tpu7x:2x2x1
jax: 0.10.0
libtpu: 0.0.40
codegen_flags: <defaults>
</compile_context>

<pallas_src>
import jax
import jax.numpy as jnp
from jax.experimental import pallas as pl
from jax.experimental.pallas import tpu as pltpu

ALPHA = 0.1      # LeakyReLU negative slope (module default activation='leaky_relu')
BN_EPS = 1e-5


def _leaky(x):
    return jnp.where(x > 0, x, ALPHA * x)


# ------------------------------ Pallas kernel ------------------------------

def _make_kernel(H):
    def kernel(xcat_ref, xsc_ref, w1_ref, b1_ref, w2_ref, ws_ref, b2s_ref, out_ref):
        """One image per grid step, everything lane-dense (last dim = W*C).

        xcat_ref : (H+2, 3*W*Cin)   im2col-over-ky input rows (incl. 1-row halo for conv2)
        xsc_ref  : (H,   W*Cin)     shortcut input rows
        w1_ref   : (3*W*Cin, W*Cout)  conv1 banded weights, ky taps stacked on K (BN1 folded)
        b1_ref   : (1, W*Cout)
        w2_ref   : (3*W*Cout, W*Cout) conv2 banded weights, ky taps stacked on K (BN2 folded)
        ws_ref   : (W*Cin, W*Cout)    block-diagonal 1x1 shortcut weights
        b2s_ref  : (1, W*Cout)        conv2 bias + shortcut bias
        out_ref  : (H, W*Cout)
        """
        # conv1 + BN1 (folded): one deep-K bf16 matmul, f32 accumulation, then LeakyReLU.
        y1 = jnp.dot(xcat_ref[...], w1_ref[...], preferred_element_type=jnp.float32)
        y1 = _leaky(y1 + b1_ref[...])                         # (H+2, W*Cout) f32

        # conv2's zero padding over H acts on the *post-activation* map: rows 0 and H+1 of
        # y1 correspond to image rows -1 and H and must be zero (leaky(b1) != 0 otherwise).
        q = jax.lax.broadcasted_iota(jnp.int32, (H + 2, 1), 0)
        y1 = jnp.where((q >= 1) & (q <= H), y1, 0.0)

        # conv2 + BN2 (folded): fuse the 3 ky taps into one K = 3*W*Cout contraction.
        # The 3 pieces are each W*Cout lanes wide -> lane-aligned concat.
        lhs2 = jnp.concatenate([y1[0:H], y1[1:H + 1], y1[2:H + 2]],
                               axis=-1).astype(jnp.bfloat16)  # (H, 3*W*Cout)
        acc2 = jnp.dot(lhs2, w2_ref[...], preferred_element_type=jnp.float32)

        # 1x1 shortcut (block-diagonal over W), fused into the same f32 accumulator.
        acc2 += jnp.dot(xsc_ref[...], ws_ref[...], preferred_element_type=jnp.float32)

        out = _leaky(acc2 + b2s_ref[...])                     # (H, W*Cout) f32
        # TODO(synk): nn.Dropout is identity in eval mode; training-mode Bernoulli masking
        # (pltpu.prng_seed + pltpu.prng_random_bits) is not implemented.
        out_ref[...] = out.astype(out_ref.dtype)

    return kernel


# --------------------------------- wrapper ---------------------------------

def residual_block(x_nchw, params):
    """x_nchw: (B, Cin, H, W) float32 -> (B, Cout, H, W) float32 (eval-mode forward)."""
    B, Cin, H, W = x_nchw.shape
    WCin = W * Cin
    WCout = params["w1"].shape[-1]
    Cout = WCout // W

    # NHWC, fold (W, C) into the lane axis.  These transposes exist only because the module
    # interface is NCHW; a lane-dense pipeline keeps (B, H, W*C) across layers.
    x = jnp.transpose(x_nchw, (0, 2, 3, 1)).reshape(B, H, WCin)

    # conv1 im2col over ky: each of the H+2 conv1 output rows (incl. the 1-row halo conv2
    # needs) reads 3 consecutive zero-padded input rows, concatenated on the lane axis so
    # conv1 becomes a single K = 3*W*Cin contraction.  Under jit this fuses with the pad.
    xp = jnp.pad(x, ((0, 0), (2, 2), (0, 0)))                          # (B, H+4, W*Cin)
    xcat = jnp.concatenate([xp[:, 0:H + 2], xp[:, 1:H + 3], xp[:, 2:H + 4]],
                           axis=-1).astype(jnp.bfloat16)               # (B, H+2, 3*W*Cin)
    xsc = x.astype(jnp.bfloat16)                                       # (B, H,   W*Cin)

    out = pl.pallas_call(
        _make_kernel(H),
        out_shape=jax.ShapeDtypeStruct((B, H, WCout), jnp.float32),
        grid=(B,),
        in_specs=[
            pl.BlockSpec((None, H + 2, 3 * WCin), lambda b: (b, 0, 0)),
            pl.BlockSpec((None, H, WCin), lambda b: (b, 0, 0)),
            # Weights / biases: constant index_maps -> fetched once, VMEM-resident.
            # (pipeline_mode=pl.Buffered(1) would halve their VMEM on v7x; left at default
            #  buffering here since the whole weight set is only ~200 KiB at these shapes.)
            pl.BlockSpec((3 * WCin, WCout), lambda b: (0, 0)),
            pl.BlockSpec((1, WCout), lambda b: (0, 0)),
            pl.BlockSpec((3 * WCout, WCout), lambda b: (0, 0)),
            pl.BlockSpec((WCin, WCout), lambda b: (0, 0)),
            pl.BlockSpec((1, WCout), lambda b: (0, 0)),
        ],
        out_specs=pl.BlockSpec((None, H, WCout), lambda b: (b, 0, 0)),
        compiler_params=pltpu.CompilerParams(
            dimension_semantics=("parallel",)),
    )(xcat, xsc, params["w1"], params["b1"], params["w2"], params["ws"], params["b2s"])

    out = out.reshape(B, H, W, Cout)             # undo lane packing (outside the kernel)
    return jnp.transpose(out, (0, 3, 1, 2))      # back to NCHW (module interface only)


# ------------------------- parameter setup (glue) --------------------------

def make_raw_params(key, cin, cout):
    """Deterministic synthetic parameters in PyTorch conventions (OIHW, per-channel BN)."""
    ks = jax.random.split(key, 16)
    p = {}
    # conv1 / bn1
    p["w1"] = 0.1 * jax.random.normal(ks[0], (cout, cin, 3, 3), jnp.float32)   # OIHW
    p["b1"] = 0.1 * jax.random.normal(ks[1], (cout,), jnp.float32)
    p["g1"] = 1.0 + 0.1 * jax.random.normal(ks[2], (cout,), jnp.float32)
    p["beta1"] = 0.1 * jax.random.normal(ks[3], (cout,), jnp.float32)
    p["m1"] = 0.1 * jax.random.normal(ks[4], (cout,), jnp.float32)
    p["v1"] = 1.0 + 0.1 * jnp.abs(jax.random.normal(ks[5], (cout,), jnp.float32))
    # conv2 / bn2
    p["w2"] = 0.1 * jax.random.normal(ks[6], (cout, cout, 3, 3), jnp.float32)  # OIHW
    p["b2"] = 0.1 * jax.random.normal(ks[7], (cout,), jnp.float32)
    p["g2"] = 1.0 + 0.1 * jax.random.normal(ks[8], (cout,), jnp.float32)
    p["beta2"] = 0.1 * jax.random.normal(ks[9], (cout,), jnp.float32)
    p["m2"] = 0.1 * jax.random.normal(ks[10], (cout,), jnp.float32)
    p["v2"] = 1.0 + 0.1 * jnp.abs(jax.random.normal(ks[11], (cout,), jnp.float32))
    # shortcut 1x1 conv (Cin != Cout -> present; plain Conv2d, no BN, matching the module)
    p["ws"] = 0.1 * jax.random.normal(ks[12], (cout, cin, 1, 1), jnp.float32)  # OIHW
    p["bs"] = 0.1 * jax.random.normal(ks[13], (cout,), jnp.float32)
    return p


def _band_conv_weights(w_hwio, W):
    """(3,3,Ci,Co) HWIO -> (3, W*Ci, W*Co): one banded matrix per ky tap, with the width
    zero padding (padding=1) folded in as zero rows.

    NOTE: size scales as W^2*Ci*Co and is (W-3)/W zeros; fine here (<200 KiB total) but at
    large W / channels switch to per-kx matmuls with pltpu.roll on the lane axis or tile W
    to stay inside v7x's 64 MiB VMEM."""
    kh, kw, Ci, Co = w_hwio.shape
    win = jnp.arange(W)[:, None]                     # input col
    wout = jnp.arange(W)[None, :]                    # output col
    kx = win - wout + 1                              # kernel x tap for (win, wout)
    valid = (kx >= 0) & (kx < kw)
    taps = w_hwio[:, jnp.clip(kx, 0, kw - 1), :, :]  # (kh, W, W, Ci, Co)
    taps = jnp.where(valid[None, :, :, None, None], taps, 0.0)
    taps = jnp.transpose(taps, (0, 1, 3, 2, 4))      # (kh, win, Ci, wout, Co)
    return taps.reshape(kh, W * Ci, W * Co)


def _blockdiag_1x1(ws, W):
    """(Ci,Co) 1x1 conv -> block-diagonal (W*Ci, W*Co) acting on the lane-packed layout."""
    Ci, Co = ws.shape
    eye = jnp.eye(W, dtype=ws.dtype)
    return (eye[:, None, :, None] * ws[None, :, None, :]).reshape(W * Ci, W * Co)


def prepare_params(raw, W):
    """Fold eval-mode BatchNorm into the convs, build the lane-dense banded weights with the
    3 ky taps stacked along K, and cast weights to bf16 (biases stay f32)."""
    def fold(w_oihw, b, gamma, beta, mean, var):
        scale = gamma / jnp.sqrt(var + BN_EPS)                    # (Cout,)
        w_eff = w_oihw * scale[:, None, None, None]
        b_eff = (b - mean) * scale + beta
        return jnp.transpose(w_eff, (2, 3, 1, 0)), b_eff          # HWIO, (Cout,)

    w1, b1 = fold(raw["w1"], raw["b1"], raw["g1"], raw["beta1"], raw["m1"], raw["v1"])
    w2, b2 = fold(raw["w2"], raw["b2"], raw["g2"], raw["beta2"], raw["m2"], raw["v2"])
    ws = jnp.transpose(raw["ws"], (2, 3, 1, 0))[0, 0]             # (Cin, Cout)

    w1_band = _band_conv_weights(w1, W)                           # (3, W*Cin,  W*Cout)
    w2_band = _band_conv_weights(w2, W)                           # (3, W*Cout, W*Cout)
    return {
        "w1": w1_band.reshape(-1, w1_band.shape[-1]).astype(jnp.bfloat16),   # (3*W*Cin,  W*Cout)
        "b1": jnp.tile(b1, W)[None, :].astype(jnp.float32),                  # (1, W*Cout)
        "w2": w2_band.reshape(-1, w2_band.shape[-1]).astype(jnp.bfloat16),   # (3*W*Cout, W*Cout)
        "b2s": jnp.tile(b2 + raw["bs"], W)[None, :].astype(jnp.float32),     # (1, W*Cout)
        "ws": _blockdiag_1x1(ws, W).astype(jnp.bfloat16),                    # (W*Cin,   W*Cout)
    }


# ---------------------------- plain-JAX reference ---------------------------

def reference(x_nchw, raw):
    def conv(x, w, b, pad):
        y = jax.lax.conv_general_dilated(
            x, w, (1, 1), [(pad, pad), (pad, pad)],
            dimension_numbers=("NCHW", "OIHW", "NCHW"))
        return y + b[None, :, None, None]

    def bn(x, g, bt, m, v):
        return ((x - m[None, :, None, None]) / jnp.sqrt(v[None, :, None, None] + BN_EPS)
                * g[None, :, None, None] + bt[None, :, None, None])

    y = _leaky(bn(conv(x_nchw, raw["w1"], raw["b1"], 1),
                  raw["g1"], raw["beta1"], raw["m1"], raw["v1"]))
    y = bn(conv(y, raw["w2"], raw["b2"], 1),
           raw["g2"], raw["beta2"], raw["m2"], raw["v2"])
    sc = conv(x_nchw, raw["ws"], raw["bs"], 0)
    return _leaky(y + sc)


if __name__ == "__main__":
    key = jax.random.PRNGKey(0)
    k_x, k_p = jax.random.split(key)

    B, Cin, H, W, Cout = 2, 4, 16, 16, 8           # NCHW, like the PyTorch module
    x = jax.random.normal(k_x, (B, Cin, H, W), jnp.float32)

    raw = make_raw_params(k_p, Cin, Cout)
    params = prepare_params(raw, W)

    fwd = jax.jit(residual_block)
    out = jax.block_until_ready(fwd(x, params))
    ref = reference(x, raw)

    assert out.shape == (B, Cout, H, W), out.shape
    max_err = float(jnp.max(jnp.abs(out - ref)))
    # bf16 inputs/weights (f32 accumulation) vs. the f32 reference -> loosened tolerance.
    assert jnp.allclose(out, ref, atol=3e-2, rtol=3e-2), f"max err {max_err}"

    print("KERNEL_OK")
</pallas_src>

<mosaic_0001>
module attributes {stable_mosaic.version = 11 : i64} {
  func.func @kernel(%arg0: i32, %arg1: memref<1x18x192xbf16, #tpu.memory_space<vmem>>, %arg2: memref<1x16x64xbf16, #tpu.memory_space<vmem>>, %arg3: memref<192x128xbf16, #tpu.memory_space<vmem>>, %arg4: memref<1x128xf32, #tpu.memory_space<vmem>>, %arg5: memref<384x128xbf16, #tpu.memory_space<vmem>>, %arg6: memref<64x128xbf16, #tpu.memory_space<vmem>>, %arg7: memref<1x128xf32, #tpu.memory_space<vmem>>, %arg8: memref<1x16x128xf32, #tpu.memory_space<vmem>>) attributes {dimension_semantics = [#tpu.dimension_semantics<parallel>], iteration_bounds = array<i64: 2>, scalar_prefetch = 0 : i64, scratch_operands = 0 : i64, tpu.core_type = #tpu.core_type<tc>, window_params = [{transform_indices = @transform_0, window_bounds = array<i64: 1, 18, 192>}, {transform_indices = @transform_1, window_bounds = array<i64: 1, 16, 64>}, {pipeline_mode = #tpu.pipeline_mode<synchronous>, transform_indices = @transform_2, window_bounds = array<i64: 192, 128>}, {pipeline_mode = #tpu.pipeline_mode<synchronous>, transform_indices = @transform_3, window_bounds = array<i64: 1, 128>}, {pipeline_mode = #tpu.pipeline_mode<synchronous>, transform_indices = @transform_4, window_bounds = array<i64: 384, 128>}, {pipeline_mode = #tpu.pipeline_mode<synchronous>, transform_indices = @transform_5, window_bounds = array<i64: 64, 128>}, {pipeline_mode = #tpu.pipeline_mode<synchronous>, transform_indices = @transform_6, window_bounds = array<i64: 1, 128>}, {transform_indices = @transform_7, window_bounds = array<i64: 1, 16, 128>}]} {
    %c0 = arith.constant 0 : index
    %c0_0 = arith.constant 0 : index
    %c0_1 = arith.constant 0 : index
    %0 = vector.load %arg1[%c0, %c0_0, %c0_1] : memref<1x18x192xbf16, #tpu.memory_space<vmem>>, vector<1x18x192xbf16>
    %1 = vector.shape_cast %0 : vector<1x18x192xbf16> to vector<18x192xbf16>
    %c0_2 = arith.constant 0 : index
    %c0_3 = arith.constant 0 : index
    %2 = vector.load %arg3[%c0_2, %c0_3] : memref<192x128xbf16, #tpu.memory_space<vmem>>, vector<192x128xbf16>
    %cst = arith.constant dense<0.000000e+00> : vector<18x128xf32>
    %3 = tpu.matmul %1, %2, %cst {dimension_numbers = #tpu.dot_dimension_numbers<[1], [0], [0], [1], [0, 0, 1, 1], [], []>} : vector<18x192xbf16>, vector<192x128xbf16>, vector<18x128xf32> -> vector<18x128xf32>
    %c0_4 = arith.constant 0 : index
    %c0_5 = arith.constant 0 : index
    %4 = vector.load %arg4[%c0_4, %c0_5] : memref<1x128xf32, #tpu.memory_space<vmem>>, vector<1x128xf32>
    %5 = vector.broadcast %4 : vector<1x128xf32> to vector<18x128xf32>
    %6 = arith.addf %3, %5 : vector<18x128xf32>
    %cst_6 = arith.constant 0.000000e+00 : f32
    %7 = vector.broadcast %cst_6 : f32 to vector<18x128xf32>
    %8 = arith.cmpf ogt, %6, %7 : vector<18x128xf32>
    %cst_7 = arith.constant 1.000000e-01 : f32
    %9 = vector.broadcast %cst_7 : f32 to vector<18x128xf32>
    %10 = arith.mulf %9, %6 : vector<18x128xf32>
    %11 = arith.select %8, %6, %10 : vector<18x128xi1>, vector<18x128xf32>
    %12 = tpu.iota {dimensions = array<i32: 0>} : vector<18x1xi32>
    %c1_i32 = arith.constant 1 : i32
    %13 = vector.broadcast %c1_i32 : i32 to vector<18x1xi32>
    %14 = arith.cmpi sge, %12, %13 : vector<18x1xi32>
    %c16_i32 = arith.constant 16 : i32
    %15 = vector.broadcast %c16_i32 : i32 to vector<18x1xi32>
    %16 = arith.cmpi sle, %12, %15 : vector<18x1xi32>
    %17 = arith.andi %14, %16 : vector<18x1xi1>
    %cst_8 = arith.constant 0.000000e+00 : f32
    %18 = vector.shape_cast %17 : vector<18x1xi1> to vector<18x1xi1>
    %19 = vector.broadcast %18 : vector<18x1xi1> to vector<18x128xi1>
    %20 = vector.broadcast %cst_8 : f32 to vector<18x128xf32>
    %21 = arith.select %19, %11, %20 : vector<18x128xi1>, vector<18x128xf32>
    %22 = vector.extract_strided_slice %21 {offsets = [0, 0], sizes = [16, 128], strides = [1, 1]} : vector<18x128xf32> to vector<16x128xf32>
    %23 = vector.extract_strided_slice %21 {offsets = [1, 0], sizes = [16, 128], strides = [1, 1]} : vector<18x128xf32> to vector<16x128xf32>
    %24 = vector.extract_strided_slice %21 {offsets = [2, 0], sizes = [16, 128], strides = [1, 1]} : vector<18x128xf32> to vector<16x128xf32>
    %25 = tpu.concatenate %22, %23, %24 in 1 : vector<16x128xf32>, vector<16x128xf32>, vector<16x128xf32> -> vector<16x384xf32>
    %26 = arith.truncf %25 : vector<16x384xf32> to vector<16x384xbf16>
    %c0_9 = arith.constant 0 : index
    %c0_10 = arith.constant 0 : index
    %27 = vector.load %arg5[%c0_9, %c0_10] : memref<384x128xbf16, #tpu.memory_space<vmem>>, vector<384x128xbf16>
    %cst_11 = arith.constant dense<0.000000e+00> : vector<16x128xf32>
    %28 = tpu.matmul %26, %27, %cst_11 {dimension_numbers = #tpu.dot_dimension_numbers<[1], [0], [0], [1], [0, 0, 1, 1], [], []>} : vector<16x384xbf16>, vector<384x128xbf16>, vector<16x128xf32> -> vector<16x128xf32>
    %c0_12 = arith.constant 0 : index
    %c0_13 = arith.constant 0 : index
    %c0_14 = arith.constant 0 : index
    %29 = vector.load %arg2[%c0_12, %c0_13, %c0_14] : memref<1x16x64xbf16, #tpu.memory_space<vmem>>, vector<1x16x64xbf16>
    %30 = vector.shape_cast %29 : vector<1x16x64xbf16> to vector<16x64xbf16>
    %c0_15 = arith.constant 0 : index
    %c0_16 = arith.constant 0 : index
    %31 = vector.load %arg6[%c0_15, %c0_16] : memref<64x128xbf16, #tpu.memory_space<vmem>>, vector<64x128xbf16>
    %cst_17 = arith.constant dense<0.000000e+00> : vector<16x128xf32>
    %32 = tpu.matmul %30, %31, %cst_17 {dimension_numbers = #tpu.dot_dimension_numbers<[1], [0], [0], [1], [0, 0, 1, 1], [], []>} : vector<16x64xbf16>, vector<64x128xbf16>, vector<16x128xf32> -> vector<16x128xf32>
    %33 = arith.addf %28, %32 : vector<16x128xf32>
    %c0_18 = arith.constant 0 : index
    %c0_19 = arith.constant 0 : index
    %34 = vector.load %arg7[%c0_18, %c0_19] : memref<1x128xf32, #tpu.memory_space<vmem>>, vector<1x128xf32>
    %35 = vector.broadcast %34 : vector<1x128xf32> to vector<16x128xf32>
    %36 = arith.addf %33, %35 : vector<16x128xf32>
    %cst_20 = arith.constant 0.000000e+00 : f32
    %37 = vector.broadcast %cst_20 : f32 to vector<16x128xf32>
    %38 = arith.cmpf ogt, %36, %37 : vector<16x128xf32>
    %cst_21 = arith.constant 1.000000e-01 : f32
    %39 = vector.broadcast %cst_21 : f32 to vector<16x128xf32>
    %40 = arith.mulf %39, %36 : vector<16x128xf32>
    %41 = arith.select %38, %36, %40 : vector<16x128xi1>, vector<16x128xf32>
    %c0_22 = arith.constant 0 : index
    %c0_23 = arith.constant 0 : index
    %c0_24 = arith.constant 0 : index
    %42 = vector.load %arg8[%c0_22, %c0_23, %c0_24] : memref<1x16x128xf32, #tpu.memory_space<vmem>>, vector<1x16x128xf32>
    %43 = vector.shape_cast %42 : vector<1x16x128xf32> to vector<16x128xf32>
    %44 = vector.shape_cast %41 : vector<16x128xf32> to vector<1x16x128xf32>
    tpu.vector_store %arg8[%c0_22, %c0_23, %c0_24], %44 {strides = array<i32>} : memref<1x16x128xf32, #tpu.memory_space<vmem>>, vector<1x16x128xf32>,
    return
  }
  func.func @transform_0(%arg0: i32) -> (i32, i32, i32) {
    %c0_i32 = arith.constant 0 : i32
    %c0_i32_0 = arith.constant 0 : i32
    %c0_i32_1 = arith.constant 0 : i32
    return %arg0, %c0_i32, %c0_i32_0 : i32, i32, i32
  }
  func.func @transform_1(%arg0: i32) -> (i32, i32, i32) {
    %c0_i32 = arith.constant 0 : i32
    %c0_i32_0 = arith.constant 0 : i32
    %c0_i32_1 = arith.constant 0 : i32
    return %arg0, %c0_i32, %c0_i32_0 : i32, i32, i32
  }
  func.func @transform_2(%arg0: i32) -> (i32, i32) {
    %c0_i32 = arith.constant 0 : i32
    %c0_i32_0 = arith.constant 0 : i32
    %c0_i32_1 = arith.constant 0 : i32
    return %c0_i32, %c0_i32_0 : i32, i32
  }
  func.func @transform_3(%arg0: i32) -> (i32, i32) {
    %c0_i32 = arith.constant 0 : i32
    %c0_i32_0 = arith.constant 0 : i32
    %c0_i32_1 = arith.constant 0 : i32
    return %c0_i32, %c0_i32_0 : i32, i32
  }
  func.func @transform_4(%arg0: i32) -> (i32, i32) {
    %c0_i32 = arith.constant 0 : i32
    %c0_i32_0 = arith.constant 0 : i32
    %c0_i32_1 = arith.constant 0 : i32
    return %c0_i32, %c0_i32_0 : i32, i32
  }
  func.func @transform_5(%arg0: i32) -> (i32, i32) {
    %c0_i32 = arith.constant 0 : i32
    %c0_i32_0 = arith.constant 0 : i32
    %c0_i32_1 = arith.constant 0 : i32
    return %c0_i32, %c0_i32_0 : i32, i32
  }
  func.func @transform_6(%arg0: i32) -> (i32, i32) {
    %c0_i32 = arith.constant 0 : i32
    %c0_i32_0 = arith.constant 0 : i32
    %c0_i32_1 = arith.constant 0 : i32
    return %c0_i32, %c0_i32_0 : i32, i32
  }
  func.func @transform_7(%arg0: i32) -> (i32, i32, i32) {
    %c0_i32 = arith.constant 0 : i32
    %c0_i32_0 = arith.constant 0 : i32
    %c0_i32_1 = arith.constant 0 : i32
    return %arg0, %c0_i32, %c0_i32_0 : i32, i32, i32
  }
}

</mosaic_0001>

<llo_original>
// kernel: residual_block.1
$region0: #{residual_block.1}
  #allocation0 [shape = 'u32[]', space=smem, size = 0x4, offset = 0x4, fixed_abs, tag = 'smem constant byte address 0x4 - core index']
  #allocation1 [shape = 'u32[144,128]{1,0:T(1,128)}', space=vmem, size = 0x12000, scoped, tag = 'internal scratch']
  %s0 = inlined_call_operand.vmem [shape: bf16[2,18,192], index: 0, kind: input, shape index: {}]
  %s1 = inlined_call_operand.vmem [shape: bf16[2,16,64], index: 1, kind: input, shape index: {}]
  %s2 = inlined_call_operand.vmem [shape: bf16[192,128], index: 2, kind: input, shape index: {}]
  %s3 = inlined_call_operand.vmem [shape: f32[1,128], index: 3, kind: input, shape index: {}]
  %s4 = inlined_call_operand.vmem [shape: bf16[384,128], index: 4, kind: input, shape index: {}]
  %s5 = inlined_call_operand.vmem [shape: bf16[64,128], index: 5, kind: input, shape index: {}]
  %s6 = inlined_call_operand.vmem [shape: f32[1,128], index: 6, kind: input, shape index: {}]
  %s7 = inlined_call_operand.vmem [shape: f32[2,16,128], index: 7, kind: output, shape index: {}]
  %s8 = sld [smem:[#allocation0]]
  $region61: #{residual_block.1} parent=0
    _
  %s10 = ssub.s32 1, %s8
  %s11 = scalar_select 0, %s10, %s8
  loop: start=0, step=1, limit=4
  $region2: #{residual_block.1} parent=0 // loop_pre_header
    _
  $region3: #{residual_block.1} parent=0 // loop_header
    %s13 = sphi 0, %s17
    %p14 = scmp.ge.s32.totalorder %s13, 4
    %s23 = sphi 0, %s25
    %s26 = sphi 0, %s23
    %s27 = sphi 0, %s26
    %s43 = sphi 0, %s27
    %s49 = sphi 0, %s51
    %s52 = sphi 0, %s49
    %s53 = sphi 0, %s52
    %s69 = sphi 0, %s53
    %s73 = sphi 0, %s73
    %s75 = sphi 0, %s73
    %s76 = sphi 0, %s75
    %s90 = sphi 0, %s76
    %s94 = sphi 0, %s94
    %s96 = sphi 0, %s94
    %s97 = sphi 0, %s96
    %s111 = sphi 0, %s97
    %s115 = sphi 0, %s115
    %s117 = sphi 0, %s115
    %s118 = sphi 0, %s117
    %s132 = sphi 0, %s118
    %s136 = sphi 0, %s136
    %s138 = sphi 0, %s136
    %s139 = sphi 0, %s138
    %s153 = sphi 0, %s139
    %s157 = sphi 0, %s157
    %s159 = sphi 0, %s157
    %s160 = sphi 0, %s159
    %s174 = sphi 0, %s160
    %s180 = sphi 0, %s182
    %s183 = sphi 0, %s180
    %s184 = sphi 0, %s183
    %s200 = sphi 0, %s184
  $region4: #{residual_block.1} parent=0 // loop_header_branch
    %16 = sbr.rel (%p14) target = $region8
  $region5: #{residual_block.1} parent=0 // loop_body
    %s18 = ssub.s32 %s13, 1
    %s19 = ssub.s32 %s13, 2
    %s20 = sadd.s32 %s13, 1
    %s21 = ssub.s32 %s13, %s20
    %p22 = scmp.eq.s32.totalorder %s21, 0
    %s24 = sadd.s32 %s23, 1
    %s25 = scalar_select %p22, %s23, %s24
    %p28 = pneg %p22
    %p29 = scmp.eq.s32.totalorder %s13, 1
    %p30 = por %p28, %p29
    %p31 = scmp.ne.s32.totalorder %s23, %s26
    %p32 = scmp.eq.s32.totalorder %s13, 0
    %p33 = por %p31, %p32
    %p34 = scmp.ne.s32.totalorder %s23, %s26
    %p35 = scmp.eq.s32.totalorder %s18, 1
    %p36 = por %p34, %p35
    %p37 = scmp.ne.s32.totalorder %s26, %s27
    %p38 = scmp.eq.s32.totalorder %s18, 0
    %p39 = por %p37, %p38
    %p40 = scmp.ne.s32.totalorder %s26, %s27
    %p41 = scmp.eq.s32.totalorder %s19, 1
    %p42 = por %p40, %p41
    %p44 = scmp.ne.s32.totalorder %s27, %s43
    %p45 = scmp.eq.s32.totalorder %s19, 0
    %p46 = por %p44, %p45
    %s47 = ssub.s32 %s13, %s20
    %p48 = scmp.eq.s32.totalorder %s47, 0
    %s50 = sadd.s32 %s49, 1
    %s51 = scalar_select %p48, %s49, %s50
    %p54 = pneg %p48
    %p55 = scmp.eq.s32.totalorder %s13, 1
    %p56 = por %p54, %p55
    %p57 = scmp.ne.s32.totalorder %s49, %s52
    %p58 = scmp.eq.s32.totalorder %s13, 0
    %p59 = por %p57, %p58
    %p60 = scmp.ne.s32.totalorder %s49, %s52
    %p61 = scmp.eq.s32.totalorder %s18, 1
    %p62 = por %p60, %p61
    %p63 = scmp.ne.s32.totalorder %s52, %s53
    %p64 = scmp.eq.s32.totalorder %s18, 0
    %p65 = por %p63, %p64
    %p66 = scmp.ne.s32.totalorder %s52, %s53
    %p67 = scmp.eq.s32.totalorder %s19, 1
    %p68 = por %p66, %p67
    %p70 = scmp.ne.s32.totalorder %s53, %s69
    %p71 = scmp.eq.s32.totalorder %s19, 0
    %p72 = por %p70, %p71
    %s74 = sadd.s32 %s73, 1
    %p77 = scmp.eq.s32.totalorder %s13, 1
    %p78 = scmp.ne.s32.totalorder %s73, %s75
    %p79 = scmp.eq.s32.totalorder %s13, 0
    %p80 = por %p78, %p79
    %p81 = scmp.ne.s32.totalorder %s73, %s75
    %p82 = scmp.eq.s32.totalorder %s18, 1
    %p83 = por %p81, %p82
    %p84 = scmp.ne.s32.totalorder %s75, %s76
    %p85 = scmp.eq.s32.totalorder %s18, 0
    %p86 = por %p84, %p85
    %p87 = scmp.ne.s32.totalorder %s75, %s76
    %p88 = scmp.eq.s32.totalorder %s19, 1
    %p89 = por %p87, %p88
    %p91 = scmp.ne.s32.totalorder %s76, %s90
    %p92 = scmp.eq.s32.totalorder %s19, 0
    %p93 = por %p91, %p92
    %s95 = sadd.s32 %s94, 1
    %p98 = scmp.eq.s32.totalorder %s13, 1
    %p99 = scmp.ne.s32.totalorder %s94, %s96
    %p100 = scmp.eq.s32.totalorder %s13, 0
    %p101 = por %p99, %p100
    %p102 = scmp.ne.s32.totalorder %s94, %s96
    %p103 = scmp.eq.s32.totalorder %s18, 1
    %p104 = por %p102, %p103
    %p105 = scmp.ne.s32.totalorder %s96, %s97
    %p106 = scmp.eq.s32.totalorder %s18, 0
    %p107 = por %p105, %p106
    %p108 = scmp.ne.s32.totalorder %s96, %s97
    %p109 = scmp.eq.s32.totalorder %s19, 1
    %p110 = por %p108, %p109
    %p112 = scmp.ne.s32.totalorder %s97, %s111
    %p113 = scmp.eq.s32.totalorder %s19, 0
    %p114 = por %p112, %p113
    %s116 = sadd.s32 %s115, 1
    %p119 = scmp.eq.s32.totalorder %s13, 1
    %p120 = scmp.ne.s32.totalorder %s115, %s117
    %p121 = scmp.eq.s32.totalorder %s13, 0
    %p122 = por %p120, %p121
    %p123 = scmp.ne.s32.totalorder %s115, %s117
    %p124 = scmp.eq.s32.totalorder %s18, 1
    %p125 = por %p123, %p124
    %p126 = scmp.ne.s32.totalorder %s117, %s118
    %p127 = scmp.eq.s32.totalorder %s18, 0
    %p128 = por %p126, %p127
    %p129 = scmp.ne.s32.totalorder %s117, %s118
    %p130 = scmp.eq.s32.totalorder %s19, 1
    %p131 = por %p129, %p130
    %p133 = scmp.ne.s32.totalorder %s118, %s132
    %p134 = scmp.eq.s32.totalorder %s19, 0
    %p135 = por %p133, %p134
    %s137 = sadd.s32 %s136, 1
    %p140 = scmp.eq.s32.totalorder %s13, 1
    %p141 = scmp.ne.s32.totalorder %s136, %s138
    %p142 = scmp.eq.s32.totalorder %s13, 0
    %p143 = por %p141, %p142
    %p144 = scmp.ne.s32.totalorder %s136, %s138
    %p145 = scmp.eq.s32.totalorder %s18, 1
    %p146 = por %p144, %p145
    %p147 = scmp.ne.s32.totalorder %s138, %s139
    %p148 = scmp.eq.s32.totalorder %s18, 0
    %p149 = por %p147, %p148
    %p150 = scmp.ne.s32.totalorder %s138, %s139
    %p151 = scmp.eq.s32.totalorder %s19, 1
    %p152 = por %p150, %p151
    %p154 = scmp.ne.s32.totalorder %s139, %s153
    %p155 = scmp.eq.s32.totalorder %s19, 0
    %p156 = por %p154, %p155
    %s158 = sadd.s32 %s157, 1
    %p161 = scmp.eq.s32.totalorder %s13, 1
    %p162 = scmp.ne.s32.totalorder %s157, %s159
    %p163 = scmp.eq.s32.totalorder %s13, 0
    %p164 = por %p162, %p163
    %p165 = scmp.ne.s32.totalorder %s157, %s159
    %p166 = scmp.eq.s32.totalorder %s18, 1
    %p167 = por %p165, %p166
    %p168 = scmp.ne.s32.totalorder %s159, %s160
    %p169 = scmp.eq.s32.totalorder %s18, 0
    %p170 = por %p168, %p169
    %p171 = scmp.ne.s32.totalorder %s159, %s160
    %p172 = scmp.eq.s32.totalorder %s19, 1
    %p173 = por %p171, %p172
    %p175 = scmp.ne.s32.totalorder %s160, %s174
    %p176 = scmp.eq.s32.totalorder %s19, 0
    %p177 = por %p175, %p176
    %s178 = ssub.s32 %s13, %s20
    %p179 = scmp.eq.s32.totalorder %s178, 0
    %s181 = sadd.s32 %s180, 1
    %s182 = scalar_select %p179, %s180, %s181
    %p185 = pneg %p179
    %p186 = scmp.eq.s32.totalorder %s13, 1
    %p187 = por %p185, %p186
    %p188 = scmp.ne.s32.totalorder %s180, %s183
    %p189 = scmp.eq.s32.totalorder %s13, 0
    %p190 = por %p188, %p189
    %p191 = scmp.ne.s32.totalorder %s180, %s183
    %p192 = scmp.eq.s32.totalorder %s18, 1
    %p193 = por %p191, %p192
    %p194 = scmp.ne.s32.totalorder %s183, %s184
    %p195 = scmp.eq.s32.totalorder %s18, 0
    %p196 = por %p194, %p195
    %p197 = scmp.ne.s32.totalorder %s183, %s184
    %p198 = scmp.eq.s32.totalorder %s19, 1
    %p199 = por %p197, %p198
    %p201 = scmp.ne.s32.totalorder %s184, %s200
    %p202 = scmp.eq.s32.totalorder %s19, 0
    %p203 = por %p201, %p202
    %p204 = scmp.le.s32.totalorder 1, %s13
    %p205 = scmp.lt.s32.totalorder %s13, 3
    %p206 = pnand %p204, %p205
    %p207 = pneg %p206
    // Predicated region
    $region9: #{residual_block.1} parent=5 // pred_check
      _
    $region10: #{residual_block.1} parent=5 // pred_check_branch
      %209 = sbr.rel (%p206) target = $region12
    $region11: #{residual_block.1} parent=5 // pred_region
      %s210 = ssub.s32 %s13, 1
      // Predicated region
      $region13: #{residual_block.1} parent=11 // pred_check
        %p211 = pneg %p86
      $region14: #{residual_block.1} parent=11 // pred_check_branch
        %213 = sbr.rel (%p211) target = $region16
      $region15: #{residual_block.1} parent=11 // pred_region
        _
      $region16: #{residual_block.1} parent=11 // pred_fallthru
        _
      // Predicated region
      $region17: #{residual_block.1} parent=11 // pred_check
        %p214 = pneg %p107
      $region18: #{residual_block.1} parent=11 // pred_check_branch
        %216 = sbr.rel (%p214) target = $region20
      $region19: #{residual_block.1} parent=11 // pred_region
        _
      $region20: #{residual_block.1} parent=11 // pred_fallthru
        _
      // Predicated region
      $region21: #{residual_block.1} parent=11 // pred_check
        %p217 = pneg %p128
      $region22: #{residual_block.1} parent=11 // pred_check_branch
        %219 = sbr.rel (%p217) target = $region24
      $region23: #{residual_block.1} parent=11 // pred_region
        _
      $region24: #{residual_block.1} parent=11 // pred_fallthru
        _
      // Predicated region
      $region25: #{residual_block.1} parent=11 // pred_check
        %p220 = pneg %p149
      $region26: #{residual_block.1} parent=11 // pred_check_branch
        %222 = sbr.rel (%p220) target = $region28
      $region27: #{residual_block.1} parent=11 // pred_region
        _
      $region28: #{residual_block.1} parent=11 // pred_fallthru
        _
      // Predicated region
      $region29: #{residual_block.1} parent=11 // pred_check
        %p223 = pneg %p170
      $region30: #{residual_block.1} parent=11 // pred_check_branch
        %225 = sbr.rel (%p223) target = $region32
      $region31: #{residual_block.1} parent=11 // pred_region
        _
      $region32: #{residual_block.1} parent=11 // pred_fallthru
        _
    $region12: #{residual_block.1} parent=5 // pred_fallthru
      _
    %p226 = scmp.lt.s32.totalorder %s13, 2
    // Predicated region
    $region33: #{residual_block.1} parent=5 // pred_check
      %p227 = pneg %p226
    $region34: #{residual_block.1} parent=5 // pred_check_branch
      %229 = sbr.rel (%p227) target = $region36
    $region35: #{residual_block.1} parent=5 // pred_region
      // Predicated region
      $region37: #{residual_block.1} parent=35 // pred_check
        %p230 = pneg %p33
      $region38: #{residual_block.1} parent=35 // pred_check_branch
        %232 = sbr.rel (%p230) target = $region40
      $region39: #{residual_block.1} parent=35 // pred_region
        %p233 = scmp.lt.s32.totalorder %s13, 1
        %s234 = scalar_select %p233, %s13, 1
        %s235 = smul.addr %s234, 6
        %s236 = smul.addr %s235, 4
        %s237 = scalar_lea.vmem %s0, %s236
      $region40: #{residual_block.1} parent=35 // pred_fallthru
        _
      // Predicated region
      $region41: #{residual_block.1} parent=35 // pred_check
        %p238 = pneg %p59
      $region42: #{residual_block.1} parent=35 // pred_check_branch
        %240 = sbr.rel (%p238) target = $region44
      $region43: #{residual_block.1} parent=35 // pred_region
        %p241 = scmp.lt.s32.totalorder %s13, 1
        %s242 = scalar_select %p241, %s13, 1
        %s243 = smul.addr %s242, 2
        %s244 = smul.addr %s243, 4
        %s245 = scalar_lea.vmem %s1, %s244
      $region44: #{residual_block.1} parent=35 // pred_fallthru
        _
    $region36: #{residual_block.1} parent=5 // pred_fallthru
      _
    %p246 = scmp.le.s32.totalorder 1, %s13
    %p247 = scmp.lt.s32.totalorder %s13, 3
    %p248 = pnand %p246, %p247
    %p249 = pneg %p248
    // Predicated region
    $region45: #{residual_block.1} parent=5 // pred_check
      _
    $region46: #{residual_block.1} parent=5 // pred_check_branch
      %251 = sbr.rel (%p248) target = $region48
    $region47: #{residual_block.1} parent=5 // pred_region
      %s252 = ssub.s32 %s13, 1
      %p253 = scmp.lt.s32.totalorder %s18, 1
      %s254 = scalar_select %p253, %s18, 1
      %s255 = smul.addr %s254, 6
      %s256 = smul.addr %s255, 4
      %s257 = scalar_lea.vmem %s0, %s256
      %p258 = pneg %p39
      %p259 = pneg %p36
      %p260 = scmp.lt.s32.totalorder %s18, 1
      %s261 = scalar_select %p260, %s18, 1
      %s262 = smul.addr %s261, 2
      %s263 = smul.addr %s262, 4
      %s264 = scalar_lea.vmem %s1, %s263
      %p265 = pneg %p65
      %p266 = pneg %p62
      %p267 = pneg %p86
      %p268 = pneg %p83
      %p269 = pneg %p107
      %p270 = pneg %p104
      %p271 = pneg %p128
      %p272 = pneg %p125
      %p273 = pneg %p149
      %p274 = pneg %p146
      %p275 = pneg %p170
      %p276 = pneg %p167
      %p277 = pneg %p196
      %p278 = pneg %p193
      %p279 = scmp.lt.s32.totalorder %s18, 1
      %s280 = scalar_select %p279, %s18, 1
      %s281 = smul.addr %s280, 2
      %s282 = smul.addr %s281, 8
      %s283 = scalar_lea.vmem %s7, %s282
      %p284 = scmp.lt.s32.totalorder %s18, 1
      %s285 = scalar_select %p284, %s18, 1
      %s286 = smul.addr %s285, 6
      %s287 = smul.addr %s286, 4
      %s288 = scalar_lea.vmem %s0, %s287
      %p289 = scmp.lt.s32.totalorder %s18, 1
      %s290 = scalar_select %p289, %s18, 1
      %s291 = smul.addr %s290, 2
      %s292 = smul.addr %s291, 4
      %s293 = scalar_lea.vmem %s1, %s292
      %p294 = scmp.lt.s32.totalorder %s18, 1
      %s295 = scalar_select %p294, %s18, 1
      %s296 = smul.addr %s295, 2
      %s297 = smul.addr %s296, 8
      %s298 = scalar_lea.vmem %s7, %s297
      %v300 = vld [vmem:[%s288] sm:$0xff]
      %v301 = vld [vmem:[%s288 + $0x8] sm:$0xff]
      %v302 = vld [vmem:[%s288 + $0x10] sm:$0x11]
      %v303 = vld [vmem:[%s2] sm:$0xf]
      %v304 = vld [vmem:[%s2 + $0x4] sm:$0xf]
      %v305 = vld [vmem:[%s2 + $0x8] sm:$0xf]
      %v306 = vld [vmem:[%s2 + $0xc] sm:$0xf]
      %v307 = vld [vmem:[%s2 + $0x10] sm:$0xf]
      %v308 = vld [vmem:[%s2 + $0x14] sm:$0xf]
      %v309 = vld [vmem:[%s2 + $0x18] sm:$0xf]
      %v310 = vld [vmem:[%s2 + $0x1c] sm:$0xf]
      %v311 = vld [vmem:[%s2 + $0x20] sm:$0xf]
      %v312 = vld [vmem:[%s2 + $0x24] sm:$0xf]
      %v313 = vld [vmem:[%s2 + $0x28] sm:$0xf]
      %v314 = vld [vmem:[%s2 + $0x2c] sm:$0xf]
      %v315 = vld [vmem:[%s2 + $0x30] sm:$0xf]
      %v316 = vld [vmem:[%s2 + $0x34] sm:$0xf]
      %v317 = vld [vmem:[%s2 + $0x38] sm:$0xf]
      %v318 = vld [vmem:[%s2 + $0x3c] sm:$0xf]
      %v319 = vld [vmem:[%s2 + $0x40] sm:$0xf]
      %v320 = vld [vmem:[%s2 + $0x44] sm:$0xf]
      %v321 = vld [vmem:[%s2 + $0x48] sm:$0xf]
      %v322 = vld [vmem:[%s2 + $0x4c] sm:$0xf]
      %v323 = vld [vmem:[%s2 + $0x50] sm:$0xf]
      %v324 = vld [vmem:[%s2 + $0x54] sm:$0xf]
      %v325 = vld [vmem:[%s2 + $0x58] sm:$0xf]
      %v326 = vld [vmem:[%s2 + $0x5c] sm:$0xf]
      %v327 = vld [vmem:[%s3] sm:$0x1]
      %v329 = vlaneseq
      %v330 = vshrl.u32 %v329, 7
      %v331 = vsub.s32 0, %v330
      %v332 = vrot.slane %v327, %v331
      %v337 = vunpack.c.l.b16 %v300
      %v338 = vunpack.c.h.b16 %v300
      %v339 = vunpack.c.l.b16 %v301
      %v340 = vunpack.c.h.b16 %v301
      %v341 = vunpack.c.l.b16 %v302
      %v342 = vunpack.c.h.b16 %v302
      %v343 = vpack.c.b16 %v339, %v337
      %v344 = vpack.c.b16 %v340, %v338
      %v345 = vpack.c.b16 %v341, %v341
      %v346 = vpack.c.b16 %v342, %v342
      %v373 = vunpack.c.l.b16 %v303
      %v374 = vunpack.c.l.b16 %v304
      %v375 = vunpack.c.l.b16 %v305
      %v376 = vunpack.c.l.b16 %v306
      %v377 = vunpack.c.l.b16 %v307
      %v378 = vunpack.c.l.b16 %v308
      %v379 = vunpack.c.l.b16 %v309
      %v380 = vunpack.c.l.b16 %v310
      %v381 = vunpack.c.l.b16 %v311
      %v382 = vunpack.c.l.b16 %v312
      %v383 = vunpack.c.l.b16 %v313
      %v384 = vunpack.c.l.b16 %v314
      %v385 = vunpack.c.l.b16 %v315
      %v386 = vunpack.c.l.b16 %v316
      %v387 = vunpack.c.l.b16 %v317
      %v388 = vunpack.c.l.b16 %v318
      %v389 = vunpack.c.l.b16 %v319
      %v390 = vunpack.c.l.b16 %v320
      %v391 = vunpack.c.l.b16 %v321
      %v392 = vunpack.c.l.b16 %v322
      %v393 = vunpack.c.l.b16 %v323
      %v394 = vunpack.c.l.b16 %v324
      %v395 = vunpack.c.l.b16 %v325
      %v396 = vunpack.c.l.b16 %v326
      %v397 = vpack.c.b16 %v374, %v373
      %v398 = vpack.c.b16 %v376, %v375
      %v399 = vpack.c.b16 %v378, %v377
      %v400 = vpack.c.b16 %v380, %v379
      %v401 = vpack.c.b16 %v382, %v381
      %v402 = vpack.c.b16 %v384, %v383
      %v403 = vpack.c.b16 %v386, %v385
      %v404 = vpack.c.b16 %v388, %v387
      %v405 = vpack.c.b16 %v390, %v389
      %v406 = vpack.c.b16 %v392, %v391
      %v407 = vpack.c.b16 %v394, %v393
      %v408 = vpack.c.b16 %v396, %v395
      %vm421 = vcmask 523264
      %v423 = vsel %vm421, %v344, 0
      %v426 = vsel %vm421, %v346, 0
      %428 = vmatprep.subr.bf16.mxu0 0
      %429 = vmatpush1.bf16.msra.mxu0 %v397
      %430 = vmatprep.subr.bf16.mxu0 0
      %431 = vmatpush1.bf16.msra.mxu0 %v398
      %432 = vmatprep.subr.bf16.mxu0 0
      %433 = vmatpush1.bf16.msra.mxu0 %v399
      %434 = vmatprep.subr.bf16.mxu0 0
      %435 = vmatpush1.bf16.msra.mxu0 %v400
      %436 = vmatprep.subr.bf16.mxu0 0
      %437 = vmatpush1.bf16.msra.mxu0 %v401
      %438 = vmatprep.subr.bf16.mxu0 0
      %439 = vmatpush1.bf16.msra.mxu0 %v402
      %440 = vmatprep.subr.bf16.mxu0 0
      %441 = vmatpush1.bf16.msra.mxu0 %v403
      %442 = vmatprep.subr.bf16.mxu0 0
      %443 = vmatpush1.bf16.msra.mxu0 %v404
      %444 = vmatprep.subr.bf16.mxu0 0
      %445 = vmatpush1.bf16.msra.mxu0 %v405
      %446 = vmatprep.subr.bf16.mxu0 0
      %447 = vmatpush1.bf16.msra.mxu0 %v406
      %448 = vmatprep.subr.bf16.mxu0 0
      %449 = vmatpush1.bf16.msra.mxu0 %v407
      %450 = vmatprep.subr.bf16.mxu0 0
      %451 = vmatpush1.bf16.msra.mxu0 %v408
      %452 = vmatprep.subr.bf16.mxu0 0
      %453 = vmatpush1.bf16.msra.mxu0 0
      %454 = vmatprep.subr.bf16.mxu0 0
      %455 = vmatpush1.bf16.msra.mxu0 0
      %456 = vmatprep.subr.bf16.mxu0 0
      %457 = vmatpush1.bf16.msra.mxu0 0
      %458 = vmatprep.subr.bf16.mxu0 0
      %459 = vmatpush1.bf16.msra.mxu0 0
      %460 = vmatprep.mubr.bf16.mxu0 %v423
      %461 = vmatmul.mubr.bf16.gmra.mrb[0].mxu0 %v343
      %v462 = vpop.f32.mrb[0].mxu0
      %v463 = vadd.f32 %v332, %v462
      %v464 = vpop.f32.mrb[0].mxu0
      %v465 = vpop.f32.mrb[0].mxu0
      %v466 = vadd.f32 %v332, %v465
      %v467 = vpop.f32.mrb[0].mxu0
      %468 = vmatprep.mubr.bf16.mxu0 %v426
      %469 = vmatmul.mubr.bf16.gmra.mrb[0].mxu0 %v345
      %v470 = vpop.f32.mrb[0].mxu0
      %v471 = vadd.f32 %v332, %v470
      %v472 = vpop.f32.mrb[0].mxu0
      %v473 = vpop.f32.mrb[0].mxu0
      %v474 = vpop.f32.mrb[0].mxu0
      %475 = vdwg.mxu0
      %vm476 = vcmp.gt.f32.partialorder %v463, 0.0
      %vm477 = vcmp.gt.f32.partialorder %v466, 0.0
      %vm478 = vcmp.gt.f32.partialorder %v471, 0.0
      %v479 = vmul.f32 %v463, 0.1
      %v480 = vmul.f32 %v466, 0.1
      %v481 = vmul.f32 %v471, 0.1
      %v482 = vsel %vm476, %v463, %v479
      %v483 = vsel %vm477, %v466, %v480
      %v484 = vsel %vm478, %v471, %v481
      %v485 = vlaneseq
      %v486 = vshrl.u32 %v485, 7
      %v487 = vadd.s32 %v486, 8
      %v488 = vadd.s32 %v486, 16
      %vm489 = vcmp.ge.s32.totalorder %v486, 1
      %vm490 = vcmp.ge.s32.totalorder %v487, 1
      %vm491 = vcmp.ge.s32.totalorder %v488, 1
      %vm492 = vcmp.le.s32.totalorder %v486, 16
      %vm493 = vcmp.le.s32.totalorder %v487, 16
      %vm494 = vcmp.le.s32.totalorder %v488, 16
      %vm495 = vmand %vm489, %vm492
      %vm496 = vmand %vm490, %vm493
      %vm497 = vmand %vm491, %vm494
      %v498 = vsel %vm495, 1, 0
      %v499 = vsel %vm496, 1, 0
      %v500 = vsel %vm497, 1, 0
      %vm501 = vcmp.eq.s32.totalorder %v498, 1
      %vm502 = vcmp.eq.s32.totalorder %v499, 1
      %vm503 = vcmp.eq.s32.totalorder %v500, 1
      %v504 = vsel %vm501, %v482, 0.0
      %v505 = vsel %vm502, %v483, 0.0
      %v506 = vsel %vm503, %v484, 0.0
      %vm510 = vcmask 1046528
      %v511 = vrot.slane %v504, 1
      %v512 = vrot.slane %v505, 1
      %v513 = vsel %vm510, %v511, %v512
      %v514 = vrot.slane %v506, 1
      %v515 = vsel %vm510, %v512, %v514
      %vm518 = vcmask 1045504
      %v519 = vrot.slane %v504, 2
      %v520 = vrot.slane %v505, 2
      %v521 = vsel %vm518, %v519, %v520
      %v522 = vrot.slane %v506, 2
      %v523 = vsel %vm518, %v520, %v522
      %v526 = vpack.c.bf16 %v505, %v504
      %v527 = vpack.c.bf16 %v515, %v513
      %v528 = vpack.c.bf16 %v523, %v521
      %v529 = vld [vmem:[%s4] sm:$0xf]
      %v530 = vld [vmem:[%s4 + $0x4] sm:$0xf]
      %v531 = vld [vmem:[%s4 + $0x8] sm:$0xf]
      %v532 = vld [vmem:[%s4 + $0xc] sm:$0xf]
      %v533 = vld [vmem:[%s4 + $0x10] sm:$0xf]
      %v534 = vld [vmem:[%s4 + $0x14] sm:$0xf]
      %v535 = vld [vmem:[%s4 + $0x18] sm:$0xf]
      %v536 = vld [vmem:[%s4 + $0x1c] sm:$0xf]
      %v537 = vld [vmem:[%s4 + $0x20] sm:$0xf]
      %v538 = vld [vmem:[%s4 + $0x24] sm:$0xf]
      %v539 = vld [vmem:[%s4 + $0x28] sm:$0xf]
      %v540 = vld [vmem:[%s4 + $0x2c] sm:$0xf]
      %v541 = vld [vmem:[%s4 + $0x30] sm:$0xf]
      %v542 = vld [vmem:[%s4 + $0x34] sm:$0xf]
      %v543 = vld [vmem:[%s4 + $0x38] sm:$0xf]
      %v544 = vld [vmem:[%s4 + $0x3c] sm:$0xf]
      %v545 = vld [vmem:[%s4 + $0x40] sm:$0xf]
      %v546 = vld [vmem:[%s4 + $0x44] sm:$0xf]
      %v547 = vld [vmem:[%s4 + $0x48] sm:$0xf]
      %v548 = vld [vmem:[%s4 + $0x4c] sm:$0xf]
      %v549 = vld [vmem:[%s4 + $0x50] sm:$0xf]
      %v550 = vld [vmem:[%s4 + $0x54] sm:$0xf]
      %v551 = vld [vmem:[%s4 + $0x58] sm:$0xf]
      %v552 = vld [vmem:[%s4 + $0x5c] sm:$0xf]
      %v553 = vld [vmem:[%s4 + $0x60] sm:$0xf]
      %v554 = vld [vmem:[%s4 + $0x64] sm:$0xf]
      %v555 = vld [vmem:[%s4 + $0x68] sm:$0xf]
      %v556 = vld [vmem:[%s4 + $0x6c] sm:$0xf]
      %v557 = vld [vmem:[%s4 + $0x70] sm:$0xf]
      %v558 = vld [vmem:[%s4 + $0x74] sm:$0xf]
      %v559 = vld [vmem:[%s4 + $0x78] sm:$0xf]
      %v560 = vld [vmem:[%s4 + $0x7c] sm:$0xf]
      %v561 = vld [vmem:[%s4 + $0x80] sm:$0xf]
      %v562 = vld [vmem:[%s4 + $0x84] sm:$0xf]
      %v563 = vld [vmem:[%s4 + $0x88] sm:$0xf]
      %v564 = vld [vmem:[%s4 + $0x8c] sm:$0xf]
      %v565 = vld [vmem:[%s4 + $0x90] sm:$0xf]
      %v566 = vld [vmem:[%s4 + $0x94] sm:$0xf]
      %v567 = vld [vmem:[%s4 + $0x98] sm:$0xf]
      %v568 = vld [vmem:[%s4 + $0x9c] sm:$0xf]
      %v569 = vld [vmem:[%s4 + $0xa0] sm:$0xf]
      %v570 = vld [vmem:[%s4 + $0xa4] sm:$0xf]
      %v571 = vld [vmem:[%s4 + $0xa8] sm:$0xf]
      %v572 = vld [vmem:[%s4 + $0xac] sm:$0xf]
      %v573 = vld [vmem:[%s4 + $0xb0] sm:$0xf]
      %v574 = vld [vmem:[%s4 + $0xb4] sm:$0xf]
      %v575 = vld [vmem:[%s4 + $0xb8] sm:$0xf]
      %v576 = vld [vmem:[%s4 + $0xbc] sm:$0xf]
      %v577 = vld [vmem:[%s293] sm:$0xf]
      %v578 = vld [vmem:[%s293 + $0x4] sm:$0xf]
      %v579 = vld [vmem:[%s5] sm:$0xf]
      %v580 = vld [vmem:[%s5 + $0x4] sm:$0xf]
      %v581 = vld [vmem:[%s5 + $0x8] sm:$0xf]
      %v582 = vld [vmem:[%s5 + $0xc] sm:$0xf]
      %v583 = vld [vmem:[%s5 + $0x10] sm:$0xf]
      %v584 = vld [vmem:[%s5 + $0x14] sm:$0xf]
      %v585 = vld [vmem:[%s5 + $0x18] sm:$0xf]
      %v586 = vld [vmem:[%s5 + $0x1c] sm:$0xf]
      %v589 = vunpack.c.l.b16 %v577
      %v590 = vunpack.c.l.b16 %v578
      %v591 = vpack.c.b16 %v590, %v589
      %v600 = vunpack.c.l.b16 %v579
      %v601 = vunpack.c.l.b16 %v580
      %v602 = vunpack.c.l.b16 %v581
      %v603 = vunpack.c.l.b16 %v582
      %v604 = vunpack.c.l.b16 %v583
      %v605 = vunpack.c.l.b16 %v584
      %v606 = vunpack.c.l.b16 %v585
      %v607 = vunpack.c.l.b16 %v586
      %v608 = vpack.c.b16 %v601, %v600
      %v609 = vpack.c.b16 %v603, %v602
      %v610 = vpack.c.b16 %v605, %v604
      %v611 = vpack.c.b16 %v607, %v606
      %v617 = vsel %vm421, %v591, 0
      %619 = vmatprep.subr.bf16.mxu0 0
      %620 = vmatpush1.bf16.msra.mxu0 %v608
      %621 = vmatprep.subr.bf16.mxu0 0
      %622 = vmatpush1.bf16.msra.mxu0 %v609
      %623 = vmatprep.subr.bf16.mxu0 0
      %624 = vmatpush1.bf16.msra.mxu0 %v610
      %625 = vmatprep.subr.bf16.mxu0 0
      %626 = vmatpush1.bf16.msra.mxu0 %v611
      %627 = vmatprep.subr.bf16.mxu0 0
      %628 = vmatpush1.bf16.msra.mxu0 0
      %629 = vmatprep.subr.bf16.mxu0 0
      %630 = vmatpush1.bf16.msra.mxu0 0
      %631 = vmatprep.subr.bf16.mxu0 0
      %632 = vmatpush1.bf16.msra.mxu0 0
      %633 = vmatprep.subr.bf16.mxu0 0
      %634 = vmatpush1.bf16.msra.mxu0 0
      %635 = vmatprep.subr.bf16.mxu0 0
      %636 = vmatpush1.bf16.msra.mxu0 0
      %637 = vmatprep.subr.bf16.mxu0 0
      %638 = vmatpush1.bf16.msra.mxu0 0
      %639 = vmatprep.subr.bf16.mxu0 0
      %640 = vmatpush1.bf16.msra.mxu0 0
      %641 = vmatprep.subr.bf16.mxu0 0
      %642 = vmatpush1.bf16.msra.mxu0 0
      %643 = vmatprep.subr.bf16.mxu0 0
      %644 = vmatpush1.bf16.msra.mxu0 0
      %645 = vmatprep.subr.bf16.mxu0 0
      %646 = vmatpush1.bf16.msra.mxu0 0
      %647 = vmatprep.subr.bf16.mxu0 0
      %648 = vmatpush1.bf16.msra.mxu0 0
      %649 = vmatprep.subr.bf16.mxu0 0
      %650 = vmatpush1.bf16.msra.mxu0 0
      %651 = vmatprep.mubr.bf16.mxu0 0
      %652 = vmatmul.mubr.bf16.gmra.mrb[0].mxu0 %v617
      %v653 = vpop.f32.mrb[0].mxu0
      %v654 = vadd.f32 0.0, %v653
      %v655 = vpop.f32.mrb[0].mxu0
      %v656 = vpop.f32.mrb[0].mxu0
      %v657 = vadd.f32 0.0, %v656
      %v658 = vpop.f32.mrb[0].mxu0
      %659 = vdwg.mxu0
      %v708 = vunpack.c.l.b16 %v529
      %v709 = vunpack.c.l.b16 %v530
      %v710 = vunpack.c.l.b16 %v531
      %v711 = vunpack.c.l.b16 %v532
      %v712 = vunpack.c.l.b16 %v533
      %v713 = vunpack.c.l.b16 %v534
      %v714 = vunpack.c.l.b16 %v535
      %v715 = vunpack.c.l.b16 %v536
      %v716 = vunpack.c.l.b16 %v537
      %v717 = vunpack.c.l.b16 %v538
      %v718 = vunpack.c.l.b16 %v539
      %v719 = vunpack.c.l.b16 %v540
      %v720 = vunpack.c.l.b16 %v541
      %v721 = vunpack.c.l.b16 %v542
      %v722 = vunpack.c.l.b16 %v543
      %v723 = vunpack.c.l.b16 %v544
      %v724 = vunpack.c.l.b16 %v545
      %v725 = vunpack.c.l.b16 %v546
      %v726 = vunpack.c.l.b16 %v547
      %v727 = vunpack.c.l.b16 %v548
      %v728 = vunpack.c.l.b16 %v549
      %v729 = vunpack.c.l.b16 %v550
      %v730 = vunpack.c.l.b16 %v551
      %v731 = vunpack.c.l.b16 %v552
      %v732 = vunpack.c.l.b16 %v553
      %v733 = vunpack.c.l.b16 %v554
      %v734 = vunpack.c.l.b16 %v555
      %v735 = vunpack.c.l.b16 %v556
      %v736 = vunpack.c.l.b16 %v557
      %v737 = vunpack.c.l.b16 %v558
      %v738 = vunpack.c.l.b16 %v559
      %v739 = vunpack.c.l.b16 %v560
      %v740 = vunpack.c.l.b16 %v561
      %v741 = vunpack.c.l.b16 %v562
      %v742 = vunpack.c.l.b16 %v563
      %v743 = vunpack.c.l.b16 %v564
      %v744 = vunpack.c.l.b16 %v565
      %v745 = vunpack.c.l.b16 %v566
      %v746 = vunpack.c.l.b16 %v567
      %v747 = vunpack.c.l.b16 %v568
      %v748 = vunpack.c.l.b16 %v569
      %v749 = vunpack.c.l.b16 %v570
      %v750 = vunpack.c.l.b16 %v571
      %v751 = vunpack.c.l.b16 %v572
      %v752 = vunpack.c.l.b16 %v573
      %v753 = vunpack.c.l.b16 %v574
      %v754 = vunpack.c.l.b16 %v575
      %v755 = vunpack.c.l.b16 %v576
      %v756 = vpack.c.b16 %v709, %v708
      %v757 = vpack.c.b16 %v711, %v710
      %v758 = vpack.c.b16 %v713, %v712
      %v759 = vpack.c.b16 %v715, %v714
      %v760 = vpack.c.b16 %v717, %v716
      %v761 = vpack.c.b16 %v719, %v718
      %v762 = vpack.c.b16 %v721, %v720
      %v763 = vpack.c.b16 %v723, %v722
      %v764 = vpack.c.b16 %v725, %v724
      %v765 = vpack.c.b16 %v727, %v726
      %v766 = vpack.c.b16 %v729, %v728
      %v767 = vpack.c.b16 %v731, %v730
      %v768 = vpack.c.b16 %v733, %v732
      %v769 = vpack.c.b16 %v735, %v734
      %v770 = vpack.c.b16 %v737, %v736
      %v771 = vpack.c.b16 %v739, %v738
      %v772 = vpack.c.b16 %v741, %v740
      %v773 = vpack.c.b16 %v743, %v742
      %v774 = vpack.c.b16 %v745, %v744
      %v775 = vpack.c.b16 %v747, %v746
      %v776 = vpack.c.b16 %v749, %v748
      %v777 = vpack.c.b16 %v751, %v750
      %v778 = vpack.c.b16 %v753, %v752
      %v779 = vpack.c.b16 %v755, %v754
      %804 = vmatprep.subr.bf16.mxu0 0
      %805 = vmatpush1.bf16.msra.mxu0 %v756
      %806 = vmatprep.subr.bf16.mxu0 0
      %807 = vmatpush1.bf16.msra.mxu0 %v757
      %808 = vmatprep.subr.bf16.mxu0 0
      %809 = vmatpush1.bf16.msra.mxu0 %v758
      %810 = vmatprep.subr.bf16.mxu0 0
      %811 = vmatpush1.bf16.msra.mxu0 %v759
      %812 = vmatprep.subr.bf16.mxu0 0
      %813 = vmatpush1.bf16.msra.mxu0 %v760
      %814 = vmatprep.subr.bf16.mxu0 0
      %815 = vmatpush1.bf16.msra.mxu0 %v761
      %816 = vmatprep.subr.bf16.mxu0 0
      %817 = vmatpush1.bf16.msra.mxu0 %v762
      %818 = vmatprep.subr.bf16.mxu0 0
      %819 = vmatpush1.bf16.msra.mxu0 %v763
      %820 = vmatprep.subr.bf16.mxu0 0
      %821 = vmatpush1.bf16.msra.mxu0 %v764
      %822 = vmatprep.subr.bf16.mxu0 0
      %823 = vmatpush1.bf16.msra.mxu0 %v765
      %824 = vmatprep.subr.bf16.mxu0 0
      %825 = vmatpush1.bf16.msra.mxu0 %v766
      %826 = vmatprep.subr.bf16.mxu0 0
      %827 = vmatpush1.bf16.msra.mxu0 %v767
      %828 = vmatprep.subr.bf16.mxu0 0
      %829 = vmatpush1.bf16.msra.mxu0 %v768
      %830 = vmatprep.subr.bf16.mxu0 0
      %831 = vmatpush1.bf16.msra.mxu0 %v769
      %832 = vmatprep.subr.bf16.mxu0 0
      %833 = vmatpush1.bf16.msra.mxu0 %v770
      %834 = vmatprep.subr.bf16.mxu0 0
      %835 = vmatpush1.bf16.msra.mxu0 %v771
      %836 = vmatprep.mubr.bf16.mxu0 %v527
      %837 = vmatmul.mubr.bf16.gmra.mrb[0].mxu0 %v526
      %v838 = vpop.f32.mrb[0].mxu0
      %v839 = vadd.f32 %v654, %v838
      %v840 = vpop.f32.mrb[0].mxu0
      %v841 = vpop.f32.mrb[0].mxu0
      %v842 = vadd.f32 %v657, %v841
      %v843 = vpop.f32.mrb[0].mxu0
      %844 = vdwg.mxu0
      %845 = vmatprep.subr.bf16.mxu0 0
      %846 = vmatpush1.bf16.msra.mxu0 %v772
      %847 = vmatprep.subr.bf16.mxu0 0
      %848 = vmatpush1.bf16.msra.mxu0 %v773
      %849 = vmatprep.subr.bf16.mxu0 0
      %850 = vmatpush1.bf16.msra.mxu0 %v774
      %851 = vmatprep.subr.bf16.mxu0 0
      %852 = vmatpush1.bf16.msra.mxu0 %v775
      %853 = vmatprep.subr.bf16.mxu0 0
      %854 = vmatpush1.bf16.msra.mxu0 %v776
      %855 = vmatprep.subr.bf16.mxu0 0
      %856 = vmatpush1.bf16.msra.mxu0 %v777
      %857 = vmatprep.subr.bf16.mxu0 0
      %858 = vmatpush1.bf16.msra.mxu0 %v778
      %859 = vmatprep.subr.bf16.mxu0 0
      %860 = vmatpush1.bf16.msra.mxu0 %v779
      %861 = vmatprep.subr.bf16.mxu0 0
      %862 = vmatpush1.bf16.msra.mxu0 0
      %863 = vmatprep.subr.bf16.mxu0 0
      %864 = vmatpush1.bf16.msra.mxu0 0
      %865 = vmatprep.subr.bf16.mxu0 0
      %866 = vmatpush1.bf16.msra.mxu0 0
      %867 = vmatprep.subr.bf16.mxu0 0
      %868 = vmatpush1.bf16.msra.mxu0 0
      %869 = vmatprep.subr.bf16.mxu0 0
      %870 = vmatpush1.bf16.msra.mxu0 0
      %871 = vmatprep.subr.bf16.mxu0 0
      %872 = vmatpush1.bf16.msra.mxu0 0
      %873 = vmatprep.subr.bf16.mxu0 0
      %874 = vmatpush1.bf16.msra.mxu0 0
      %875 = vmatprep.subr.bf16.mxu0 0
      %876 = vmatpush1.bf16.msra.mxu0 0
      %877 = vmatprep.mubr.bf16.mxu0 0
      %878 = vmatmul.mubr.bf16.gmra.mrb[0].mxu0 %v528
      %v879 = vpop.f32.mrb[0].mxu0
      %v880 = vadd.f32 %v839, %v879
      %v881 = vpop.f32.mrb[0].mxu0
      %v882 = vpop.f32.mrb[0].mxu0
      %v883 = vadd.f32 %v842, %v882
      %v884 = vpop.f32.mrb[0].mxu0
      %885 = vdwg.mxu0
      %v886 = vld [vmem:[%s6] sm:$0x1]
      %v888 = vlaneseq
      %v889 = vshrl.u32 %v888, 7
      %v890 = vsub.s32 0, %v889
      %v891 = vrot.slane %v886, %v890
      %v893 = vadd.f32 %v880, %v891
      %v894 = vadd.f32 %v883, %v891
      %vm895 = vcmp.gt.f32.partialorder %v893, 0.0
      %vm896 = vcmp.gt.f32.partialorder %v894, 0.0
      %v897 = vmul.f32 %v893, 0.1
      %v898 = vmul.f32 %v894, 0.1
      %v899 = vsel %vm895, %v893, %v897
      %v900 = vsel %vm896, %v894, %v898
      %901 = vst [vmem:[%s298] sm:$0xff] %v899
      %902 = vst [vmem:[%s298 + $0x8] sm:$0xff] %v900
      %p903 = scmp.lt.s32.totalorder %s18, 1
      %s904 = scalar_select %p903, %s18, 1
      %s905 = smul.addr %s904, 2
      %s906 = smul.addr %s905, 8
      %s907 = scalar_lea.vmem %s7, %s906
      // Predicated region
      $region49: #{residual_block.1} parent=47 // pred_check
        %p908 = pneg %p193
      $region50: #{residual_block.1} parent=47 // pred_check_branch
        %910 = sbr.rel (%p908) target = $region52
      $region51: #{residual_block.1} parent=47 // pred_region
        _
      $region52: #{residual_block.1} parent=47 // pred_fallthru
        _
    $region48: #{residual_block.1} parent=5 // pred_fallthru
      _
    %p911 = scmp.le.s32.totalorder 2, %s13
    // Predicated region
    $region53: #{residual_block.1} parent=5 // pred_check
      %p912 = pneg %p911
    $region54: #{residual_block.1} parent=5 // pred_check_branch
      %914 = sbr.rel (%p912) target = $region56
    $region55: #{residual_block.1} parent=5 // pred_region
      %s915 = ssub.s32 %s13, 2
      // Predicated region
      $region57: #{residual_block.1} parent=55 // pred_check
        %p916 = pneg %p199
      $region58: #{residual_block.1} parent=55 // pred_check_branch
        %918 = sbr.rel (%p916) target = $region60
      $region59: #{residual_block.1} parent=55 // pred_region
        %p919 = scmp.lt.s32.totalorder %s19, 1
        %s920 = scalar_select %p919, %s19, 1
        %s921 = smul.addr %s920, 2
        %s922 = smul.addr %s921, 8
        %s923 = scalar_lea.vmem %s7, %s922
      $region60: #{residual_block.1} parent=55 // pred_fallthru
        _
    $region56: #{residual_block.1} parent=5 // pred_fallthru
      _
  $region6: #{residual_block.1} parent=0 // loop_footer
    %s17 = sadd.s32 1, %s13
  $region7: #{residual_block.1} parent=0 // loop_footer_branch
    %12 = sbr.rel target = $region3
  $region8: #{residual_block.1} parent=0 // loop_exit
    _

</llo_original>
